<compile_context>
chip_gen: v7x
topology: tpu7x:2x2x1
jax: 0.10.0
libtpu: 0.0.40
codegen_flags: <defaults>
</compile_context>

<pallas_src>
import functools

import jax
import jax.numpy as jnp
from jax.experimental import pallas as pl
from jax.experimental.pallas import tpu as pltpu

_NUM_SLICES = 2  # v7x has 2 TensorCores; harmless on 1-TC chips.


def _cdiv(a, b):
    return -(-a // b)


def _sublane_multiple(dtype):
    itemsize = jnp.dtype(dtype).itemsize
    return 8 * max(1, 4 // itemsize)  # 8 for f32, 16 for bf16, 32 for int8/fp8


def _vmem_capacity_bytes():
    try:
        return int(pltpu.get_tpu_info().vmem_capacity_bytes)
    except Exception:  # conservative fallback (v7x-sized VMEM)
        return 64 * 1024 * 1024


def _budgets():
    cap = _vmem_capacity_bytes()
    vmem_limit = min(int(cap * 0.7), 100 * 1024 * 1024)      # ~89 MiB / ~44 MiB
    tile_bytes = 8 * 1024 * 1024 if cap >= 100 * 1024 * 1024 else 4 * 1024 * 1024
    return vmem_limit, tile_bytes


def _choose_2d_view(shape, dtype, tile_bytes):
    """Pick a free (contiguous) 2-D factorization (G, P) of an array shape so a
    (8, P) row-slab stays within the per-input tile budget and P is lane-dense."""
    itemsize = jnp.dtype(dtype).itemsize
    dims = tuple(int(d) for d in shape)
    total = 1
    for d in dims:
        total *= d
    p_cands = []
    prod = 1
    for d in reversed(dims):
        prod *= d
        p_cands.append(prod)
    p_cands.reverse()  # p_cands[k] = prod(dims[k:]); prefer the largest P that fits
    for p2 in p_cands:
        if p2 >= 128 and 8 * p2 * itemsize <= tile_bytes:
            return total // p2, p2
    p2 = max(dims[-1], 1) if dims else 1
    return total // p2, p2


def _row_plan(g, p, dtype, tile_bytes):
    """Row-block size + grid split for streaming a (g, p) 2-D view."""
    mult = _sublane_multiple(dtype)
    itemsize = jnp.dtype(dtype).itemsize
    if g <= mult:
        gb = g                              # full leading dim -> always legal
    else:
        by_bytes = max(mult, (tile_bytes // (p * itemsize)) // mult * mult)
        gb = min(by_bytes, (g // mult) * mult)
    nb_total = _cdiv(g, gb)
    ns = _NUM_SLICES if nb_total >= 2 else 1
    nb_per = _cdiv(nb_total, ns)
    return gb, nb_total, nb_per, ns


def _accum_row0(out_ref, vals):
    """Add per-lane column sums of `vals` into row 0 of the resident (8, P)
    accumulator block (rows 1..7 stay zero)."""
    s = jnp.sum(vals, axis=0, keepdims=True)                         # (1, P)
    row0 = jax.lax.broadcasted_iota(jnp.int32, out_ref.shape, 0) == 0
    out_ref[...] += jnp.where(row0, s, 0.0)


# ---------------------------------------------------------------------------
# Kernel 1: streaming sum of squared differences (MSE numerator).
# ---------------------------------------------------------------------------
def _sse_kernel(yt_ref, yp_ref, out_ref, *, g, gb, nb_per):
    c = pl.program_id(0)
    i = pl.program_id(1)
    gblk = c * nb_per + i                     # unclamped global row-block index

    @pl.when(i == 0)
    def _init():
        out_ref[...] = jnp.zeros_like(out_ref)

    d = yt_ref[...].astype(jnp.float32) - yp_ref[...].astype(jnp.float32)
    sq = d * d

    full = (gblk + 1) * gb <= g               # block fully inside valid rows

    @pl.when(full)
    def _full():
        _accum_row0(out_ref, sq)

    @pl.when(jnp.logical_not(full))           # partial tail / duplicate block
    def _tail():
        row = gblk * gb + jax.lax.broadcasted_iota(jnp.int32, sq.shape, 0)
        _accum_row0(out_ref, jnp.where(row < g, sq, 0.0))


def _sse_sum(y_true, y_pred):
    vmem_limit, tile_bytes = _budgets()
    g, p = _choose_2d_view(y_true.shape, y_true.dtype, tile_bytes)
    yt2 = y_true.reshape(g, p)                # contiguous reshape: no HBM copy
    yp2 = y_pred.reshape(g, p)
    gb, nb_total, nb_per, ns = _row_plan(g, p, y_true.dtype, tile_bytes)

    blk_idx = lambda c, i: (jnp.minimum(c * nb_per + i, nb_total - 1), 0)
    out = pl.pallas_call(
        functools.partial(_sse_kernel, g=g, gb=gb, nb_per=nb_per),
        out_shape=jax.ShapeDtypeStruct((ns * 8, p), jnp.float32),
        grid=(ns, nb_per),
        in_specs=[
            pl.BlockSpec((gb, p), blk_idx),
            pl.BlockSpec((gb, p), blk_idx),
        ],
        out_specs=pl.BlockSpec((8, p), lambda c, i: (c, 0)),
        compiler_params=pltpu.CompilerParams(
            dimension_semantics=("parallel", "arbitrary"),
            vmem_limit_bytes=vmem_limit,
        ),
    )(yt2, yp2)
    return jnp.sum(out)


# ---------------------------------------------------------------------------
# Kernel 2: streaming sum of squared finite differences of the flow field.
# Flow is viewed as (G, P) = (N*C, H*W): one image per lane-dense row, so
#   dx neighbour (w+1) = lane roll by P-1, dy neighbour (h+1) = lane roll by P-W.
# Validity masks (pre-scaled by 0.5/count) are resident (1, P) inputs.
# ---------------------------------------------------------------------------
def _grad_kernel(x_ref, mdx_ref, mdy_ref, out_ref, *, g, gb, nb_per, p, w):
    c = pl.program_id(0)
    i = pl.program_id(1)
    gblk = c * nb_per + i

    @pl.when(i == 0)
    def _init():
        out_ref[...] = jnp.zeros_like(out_ref)

    x = x_ref[...].astype(jnp.float32)
    dxd = pltpu.roll(x, shift=p - 1, axis=1) - x      # element at (h, w+1)
    dyd = pltpu.roll(x, shift=p - w, axis=1) - x      # element at (h+1, w)
    contrib = dxd * dxd * mdx_ref[...] + dyd * dyd * mdy_ref[...]

    full = (gblk + 1) * gb <= g

    @pl.when(full)
    def _full():
        _accum_row0(out_ref, contrib)

    @pl.when(jnp.logical_not(full))
    def _tail():
        row = gblk * gb + jax.lax.broadcasted_iota(jnp.int32, contrib.shape, 0)
        _accum_row0(out_ref, jnp.where(row < g, contrib, 0.0))


def _grad_loss(flow):
    n, ch, h, w = flow.shape
    g, p = n * ch, h * w
    x2 = flow.reshape(g, p)                   # contiguous reshape: no HBM copy

    dx_cnt = n * ch * h * (w - 1)
    dy_cnt = n * ch * (h - 1) * w
    # Guard H==1 / W==1 (reference would produce NaN; we return 0 contribution).
    sdx = 0.5 / dx_cnt if dx_cnt > 0 else 0.0
    sdy = 0.5 / dy_cnt if dy_cnt > 0 else 0.0

    col = jnp.arange(p, dtype=jnp.int32)
    mdx = jnp.where(col % w != w - 1, jnp.float32(sdx), jnp.float32(0.0)).reshape(1, p)
    mdy = jnp.where(col < p - w, jnp.float32(sdy), jnp.float32(0.0)).reshape(1, p)

    vmem_limit, tile_bytes = _budgets()
    gb, nb_total, nb_per, ns = _row_plan(g, p, flow.dtype, tile_bytes)
    # TODO(synk): tile the P = H*W lane axis (with a W-wide halo for the dy
    # term) when a single (8, P) row-block exceeds the VMEM budget (very large
    # single images); currently such flows fall back to one oversized block.

    blk_idx = lambda c, i: (jnp.minimum(c * nb_per + i, nb_total - 1), 0)
    out = pl.pallas_call(
        functools.partial(_grad_kernel, g=g, gb=gb, nb_per=nb_per, p=p, w=w),
        out_shape=jax.ShapeDtypeStruct((ns * 8, p), jnp.float32),
        grid=(ns, nb_per),
        in_specs=[
            pl.BlockSpec((gb, p), blk_idx),
            pl.BlockSpec((1, p), lambda c, i: (0, 0)),   # resident dx mask
            pl.BlockSpec((1, p), lambda c, i: (0, 0)),   # resident dy mask
        ],
        out_specs=pl.BlockSpec((8, p), lambda c, i: (c, 0)),
        compiler_params=pltpu.CompilerParams(
            dimension_semantics=("parallel", "arbitrary"),
            vmem_limit_bytes=vmem_limit,
        ),
    )(x2, mdx, mdy)
    return jnp.sum(out)


# ---------------------------------------------------------------------------
# Wrapper: matches LossFunction_Dense.forward -> (loss, feat, grad)
# ---------------------------------------------------------------------------
def _loss_function_dense(flow_pred, y_true, y_pred, lam=1.0):
    feat = _sse_sum(y_true, y_pred) / jnp.float32(y_true.size)
    grad = _grad_loss(flow_pred)
    loss = feat + jnp.float32(lam) * grad
    return loss, feat, grad


loss_function_dense = jax.jit(_loss_function_dense)


def _reference(flow_pred, y_true, y_pred, lam=1.0):
    feat = jnp.mean((y_true.astype(jnp.float32) - y_pred.astype(jnp.float32)) ** 2)
    s = flow_pred.astype(jnp.float32)
    dy = jnp.abs(s[:, :, 1:, :] - s[:, :, :-1, :]) ** 2
    dx = jnp.abs(s[:, :, :, 1:] - s[:, :, :, :-1]) ** 2
    grad = (jnp.mean(dx) + jnp.mean(dy)) / 2.0
    loss = feat + lam * grad
    return loss, feat, grad


if __name__ == "__main__":
    key = jax.random.PRNGKey(0)
    k1, k2, k3 = jax.random.split(key, 3)

    # flow_pred: dense flow field (2 channels); y_true / y_pred: feature maps.
    flow_pred = jax.random.normal(k1, (2, 2, 16, 16), dtype=jnp.float32)
    y_true = jax.random.normal(k2, (2, 4, 16, 16), dtype=jnp.float32)
    y_pred = jax.random.normal(k3, (2, 4, 16, 16), dtype=jnp.float32)

    loss, feat, grad = loss_function_dense(flow_pred, y_true, y_pred, 1.0)
    jax.block_until_ready((loss, feat, grad))

    ref_loss, ref_feat, ref_grad = _reference(flow_pred, y_true, y_pred, 1.0)
    assert jnp.allclose(loss, ref_loss, rtol=1e-5, atol=1e-5), (loss, ref_loss)
    assert jnp.allclose(feat, ref_feat, rtol=1e-5, atol=1e-5), (feat, ref_feat)
    assert jnp.allclose(grad, ref_grad, rtol=1e-5, atol=1e-5), (grad, ref_grad)

    print("KERNEL_OK")
</pallas_src>

<mosaic_0001>
module attributes {stable_mosaic.version = 11 : i64} {
  func.func @_sse_kernel(%arg0: i32, %arg1: i32, %arg2: memref<1x2048xf32, #tpu.memory_space<vmem>>, %arg3: memref<1x2048xf32, #tpu.memory_space<vmem>>, %arg4: memref<8x2048xf32, #tpu.memory_space<vmem>>) attributes {dimension_semantics = [#tpu.dimension_semantics<parallel>, #tpu.dimension_semantics<arbitrary>], iteration_bounds = array<i64: 1, 1>, scalar_prefetch = 0 : i64, scratch_operands = 0 : i64, tpu.core_type = #tpu.core_type<tc>, window_params = [{transform_indices = @transform_0, window_bounds = array<i64: 1, 2048>}, {transform_indices = @transform_1, window_bounds = array<i64: 1, 2048>}, {transform_indices = @transform_2, window_bounds = array<i64: 8, 2048>}]} {
    %c1_i32 = arith.constant 1 : i32
    %0 = arith.muli %arg0, %c1_i32 : i32
    %1 = arith.addi %0, %arg1 : i32
    %c0_i32 = arith.constant 0 : i32
    %2 = arith.cmpi eq, %arg1, %c0_i32 : i32
    %3 = arith.extui %2 : i1 to i32
    %c0_i32_0 = arith.constant 0 : i32
    %4 = arith.cmpi ne, %3, %c0_i32_0 : i32
    scf.if %4 {
      %cst = arith.constant 0.000000e+00 : f32
      %17 = vector.broadcast %cst : f32 to vector<8x2048xf32>
      %c0_9 = arith.constant 0 : index
      %c0_10 = arith.constant 0 : index
      %18 = vector.load %arg4[%c0_9, %c0_10] : memref<8x2048xf32, #tpu.memory_space<vmem>>, vector<8x2048xf32>
      tpu.vector_store %arg4[%c0_9, %c0_10], %17 {strides = array<i32>} : memref<8x2048xf32, #tpu.memory_space<vmem>>, vector<8x2048xf32>,
    } else {
    }
    %c0 = arith.constant 0 : index
    %c0_1 = arith.constant 0 : index
    %5 = vector.load %arg2[%c0, %c0_1] : memref<1x2048xf32, #tpu.memory_space<vmem>>, vector<1x2048xf32>
    %c0_2 = arith.constant 0 : index
    %c0_3 = arith.constant 0 : index
    %6 = vector.load %arg3[%c0_2, %c0_3] : memref<1x2048xf32, #tpu.memory_space<vmem>>, vector<1x2048xf32>
    %7 = arith.subf %5, %6 : vector<1x2048xf32>
    %8 = arith.mulf %7, %7 : vector<1x2048xf32>
    %c1_i32_4 = arith.constant 1 : i32
    %9 = arith.addi %1, %c1_i32_4 : i32
    %c1_i32_5 = arith.constant 1 : i32
    %10 = arith.muli %9, %c1_i32_5 : i32
    %c1_i32_6 = arith.constant 1 : i32
    %11 = arith.cmpi sle, %10, %c1_i32_6 : i32
    %12 = arith.extui %11 : i1 to i32
    %c0_i32_7 = arith.constant 0 : i32
    %13 = arith.cmpi ne, %12, %c0_i32_7 : i32
    scf.if %13 {
      %cst = arith.constant dense<0.000000e+00> : vector<2048xf32>
      %17 = vector.multi_reduction <add>, %8, %cst [0] : vector<1x2048xf32> to vector<2048xf32>
      %18 = vector.shape_cast %17 : vector<2048xf32> to vector<1x2048xf32>
      %19 = tpu.iota {dimensions = array<i32: 0>} : vector<8x2048xi32>
      %c0_i32_9 = arith.constant 0 : i32
      %20 = vector.broadcast %c0_i32_9 : i32 to vector<8x2048xi32>
      %21 = arith.cmpi eq, %19, %20 : vector<8x2048xi32>
      %c0_10 = arith.constant 0 : index
      %c0_11 = arith.constant 0 : index
      %22 = vector.load %arg4[%c0_10, %c0_11] : memref<8x2048xf32, #tpu.memory_space<vmem>>, vector<8x2048xf32>
      %cst_12 = arith.constant 0.000000e+00 : f32
      %23 = vector.shape_cast %18 : vector<1x2048xf32> to vector<1x2048xf32>
      %24 = vector.broadcast %23 : vector<1x2048xf32> to vector<8x2048xf32>
      %25 = vector.broadcast %cst_12 : f32 to vector<8x2048xf32>
      %26 = arith.select %21, %24, %25 : vector<8x2048xi1>, vector<8x2048xf32>
      %27 = arith.addf %22, %26 : vector<8x2048xf32>
      %c0_13 = arith.constant 0 : index
      %c0_14 = arith.constant 0 : index
      %28 = vector.load %arg4[%c0_13, %c0_14] : memref<8x2048xf32, #tpu.memory_space<vmem>>, vector<8x2048xf32>
      tpu.vector_store %arg4[%c0_13, %c0_14], %27 {strides = array<i32>} : memref<8x2048xf32, #tpu.memory_space<vmem>>, vector<8x2048xf32>,
    } else {
    }
    %true = arith.constant true
    %14 = arith.xori %11, %true : i1
    %15 = arith.extui %14 : i1 to i32
    %c0_i32_8 = arith.constant 0 : i32
    %16 = arith.cmpi ne, %15, %c0_i32_8 : i32
    scf.if %16 {
      %c1_i32_9 = arith.constant 1 : i32
      %17 = arith.muli %1, %c1_i32_9 : i32
      %18 = tpu.iota {dimensions = array<i32: 0>} : vector<1x2048xi32>
      %19 = vector.broadcast %17 : i32 to vector<1x2048xi32>
      %20 = arith.addi %19, %18 : vector<1x2048xi32>
      %c1_i32_10 = arith.constant 1 : i32
      %21 = vector.broadcast %c1_i32_10 : i32 to vector<1x2048xi32>
      %22 = arith.cmpi slt, %20, %21 : vector<1x2048xi32>
      %cst = arith.constant 0.000000e+00 : f32
      %23 = vector.broadcast %cst : f32 to vector<1x2048xf32>
      %24 = arith.select %22, %8, %23 : vector<1x2048xi1>, vector<1x2048xf32>
      %cst_11 = arith.constant dense<0.000000e+00> : vector<2048xf32>
      %25 = vector.multi_reduction <add>, %24, %cst_11 [0] : vector<1x2048xf32> to vector<2048xf32>
      %26 = vector.shape_cast %25 : vector<2048xf32> to vector<1x2048xf32>
      %27 = tpu.iota {dimensions = array<i32: 0>} : vector<8x2048xi32>
      %c0_i32_12 = arith.constant 0 : i32
      %28 = vector.broadcast %c0_i32_12 : i32 to vector<8x2048xi32>
      %29 = arith.cmpi eq, %27, %28 : vector<8x2048xi32>
      %c0_13 = arith.constant 0 : index
      %c0_14 = arith.constant 0 : index
      %30 = vector.load %arg4[%c0_13, %c0_14] : memref<8x2048xf32, #tpu.memory_space<vmem>>, vector<8x2048xf32>
      %cst_15 = arith.constant 0.000000e+00 : f32
      %31 = vector.shape_cast %26 : vector<1x2048xf32> to vector<1x2048xf32>
      %32 = vector.broadcast %31 : vector<1x2048xf32> to vector<8x2048xf32>
      %33 = vector.broadcast %cst_15 : f32 to vector<8x2048xf32>
      %34 = arith.select %29, %32, %33 : vector<8x2048xi1>, vector<8x2048xf32>
      %35 = arith.addf %30, %34 : vector<8x2048xf32>
      %c0_16 = arith.constant 0 : index
      %c0_17 = arith.constant 0 : index
      %36 = vector.load %arg4[%c0_16, %c0_17] : memref<8x2048xf32, #tpu.memory_space<vmem>>, vector<8x2048xf32>
      tpu.vector_store %arg4[%c0_16, %c0_17], %35 {strides = array<i32>} : memref<8x2048xf32, #tpu.memory_space<vmem>>, vector<8x2048xf32>,
    } else {
    }
    return
  }
  func.func @transform_0(%arg0: i32, %arg1: i32) -> (i32, i32) {
    %c1_i32 = arith.constant 1 : i32
    %0 = arith.muli %arg0, %c1_i32 : i32
    %1 = arith.addi %0, %arg1 : i32
    %c0_i32 = arith.constant 0 : i32
    %2 = arith.minsi %1, %c0_i32 : i32
    %c0_i32_0 = arith.constant 0 : i32
    %c0_i32_1 = arith.constant 0 : i32
    return %2, %c0_i32_0 : i32, i32
  }
  func.func @transform_1(%arg0: i32, %arg1: i32) -> (i32, i32) {
    %c1_i32 = arith.constant 1 : i32
    %0 = arith.muli %arg0, %c1_i32 : i32
    %1 = arith.addi %0, %arg1 : i32
    %c0_i32 = arith.constant 0 : i32
    %2 = arith.minsi %1, %c0_i32 : i32
    %c0_i32_0 = arith.constant 0 : i32
    %c0_i32_1 = arith.constant 0 : i32
    return %2, %c0_i32_0 : i32, i32
  }
  func.func @transform_2(%arg0: i32, %arg1: i32) -> (i32, i32) {
    %c0_i32 = arith.constant 0 : i32
    %c0_i32_0 = arith.constant 0 : i32
    return %arg0, %c0_i32 : i32, i32
  }
}

module attributes {stable_mosaic.version = 11 : i64} {
  func.func @_grad_kernel(%arg0: i32, %arg1: i32, %arg2: memref<4x256xf32, #tpu.memory_space<vmem>>, %arg3: memref<1x256xf32, #tpu.memory_space<vmem>>, %arg4: memref<1x256xf32, #tpu.memory_space<vmem>>, %arg5: memref<8x256xf32, #tpu.memory_space<vmem>>) attributes {dimension_semantics = [#tpu.dimension_semantics<parallel>, #tpu.dimension_semantics<arbitrary>], iteration_bounds = array<i64: 1, 1>, scalar_prefetch = 0 : i64, scratch_operands = 0 : i64, tpu.core_type = #tpu.core_type<tc>, window_params = [{transform_indices = @transform_0, window_bounds = array<i64: 4, 256>}, {pipeline_mode = #tpu.pipeline_mode<synchronous>, transform_indices = @transform_1, window_bounds = array<i64: 1, 256>}, {pipeline_mode = #tpu.pipeline_mode<synchronous>, transform_indices = @transform_2, window_bounds = array<i64: 1, 256>}, {transform_indices = @transform_3, window_bounds = array<i64: 8, 256>}]} {
    %c1_i32 = arith.constant 1 : i32
    %0 = arith.muli %arg0, %c1_i32 : i32
    %1 = arith.addi %0, %arg1 : i32
    %c0_i32 = arith.constant 0 : i32
    %2 = arith.cmpi eq, %arg1, %c0_i32 : i32
    %3 = arith.extui %2 : i1 to i32
    %c0_i32_0 = arith.constant 0 : i32
    %4 = arith.cmpi ne, %3, %c0_i32_0 : i32
    scf.if %4 {
      %cst = arith.constant 0.000000e+00 : f32
      %27 = vector.broadcast %cst : f32 to vector<8x256xf32>
      %c0_10 = arith.constant 0 : index
      %c0_11 = arith.constant 0 : index
      %28 = vector.load %arg5[%c0_10, %c0_11] : memref<8x256xf32, #tpu.memory_space<vmem>>, vector<8x256xf32>
      tpu.vector_store %arg5[%c0_10, %c0_11], %27 {strides = array<i32>} : memref<8x256xf32, #tpu.memory_space<vmem>>, vector<8x256xf32>,
    } else {
    }
    %c0 = arith.constant 0 : index
    %c0_1 = arith.constant 0 : index
    %5 = vector.load %arg2[%c0, %c0_1] : memref<4x256xf32, #tpu.memory_space<vmem>>, vector<4x256xf32>
    %c255_i32 = arith.constant 255 : i32
    %6 = tpu.dynamic_rotate %5 by %c255_i32 dim 1 : vector<4x256xf32>, i32 -> vector<4x256xf32>
    %7 = arith.subf %6, %5 : vector<4x256xf32>
    %c240_i32 = arith.constant 240 : i32
    %8 = tpu.dynamic_rotate %5 by %c240_i32 dim 1 : vector<4x256xf32>, i32 -> vector<4x256xf32>
    %9 = arith.subf %8, %5 : vector<4x256xf32>
    %10 = arith.mulf %7, %7 : vector<4x256xf32>
    %c0_2 = arith.constant 0 : index
    %c0_3 = arith.constant 0 : index
    %11 = vector.load %arg3[%c0_2, %c0_3] : memref<1x256xf32, #tpu.memory_space<vmem>>, vector<1x256xf32>
    %12 = vector.broadcast %11 : vector<1x256xf32> to vector<4x256xf32>
    %13 = arith.mulf %10, %12 : vector<4x256xf32>
    %14 = arith.mulf %9, %9 : vector<4x256xf32>
    %c0_4 = arith.constant 0 : index
    %c0_5 = arith.constant 0 : index
    %15 = vector.load %arg4[%c0_4, %c0_5] : memref<1x256xf32, #tpu.memory_space<vmem>>, vector<1x256xf32>
    %16 = vector.broadcast %15 : vector<1x256xf32> to vector<4x256xf32>
    %17 = arith.mulf %14, %16 : vector<4x256xf32>
    %18 = arith.addf %13, %17 : vector<4x256xf32>
    %c1_i32_6 = arith.constant 1 : i32
    %19 = arith.addi %1, %c1_i32_6 : i32
    %c4_i32 = arith.constant 4 : i32
    %20 = arith.muli %19, %c4_i32 : i32
    %c4_i32_7 = arith.constant 4 : i32
    %21 = arith.cmpi sle, %20, %c4_i32_7 : i32
    %22 = arith.extui %21 : i1 to i32
    %c0_i32_8 = arith.constant 0 : i32
    %23 = arith.cmpi ne, %22, %c0_i32_8 : i32
    scf.if %23 {
      %cst = arith.constant dense<0.000000e+00> : vector<256xf32>
      %27 = vector.multi_reduction <add>, %18, %cst [0] : vector<4x256xf32> to vector<256xf32>
      %28 = vector.shape_cast %27 : vector<256xf32> to vector<1x256xf32>
      %29 = tpu.iota {dimensions = array<i32: 0>} : vector<8x256xi32>
      %c0_i32_10 = arith.constant 0 : i32
      %30 = vector.broadcast %c0_i32_10 : i32 to vector<8x256xi32>
      %31 = arith.cmpi eq, %29, %30 : vector<8x256xi32>
      %c0_11 = arith.constant 0 : index
      %c0_12 = arith.constant 0 : index
      %32 = vector.load %arg5[%c0_11, %c0_12] : memref<8x256xf32, #tpu.memory_space<vmem>>, vector<8x256xf32>
      %cst_13 = arith.constant 0.000000e+00 : f32
      %33 = vector.shape_cast %28 : vector<1x256xf32> to vector<1x256xf32>
      %34 = vector.broadcast %33 : vector<1x256xf32> to vector<8x256xf32>
      %35 = vector.broadcast %cst_13 : f32 to vector<8x256xf32>
      %36 = arith.select %31, %34, %35 : vector<8x256xi1>, vector<8x256xf32>
      %37 = arith.addf %32, %36 : vector<8x256xf32>
      %c0_14 = arith.constant 0 : index
      %c0_15 = arith.constant 0 : index
      %38 = vector.load %arg5[%c0_14, %c0_15] : memref<8x256xf32, #tpu.memory_space<vmem>>, vector<8x256xf32>
      tpu.vector_store %arg5[%c0_14, %c0_15], %37 {strides = array<i32>} : memref<8x256xf32, #tpu.memory_space<vmem>>, vector<8x256xf32>,
    } else {
    }
    %true = arith.constant true
    %24 = arith.xori %21, %true : i1
    %25 = arith.extui %24 : i1 to i32
    %c0_i32_9 = arith.constant 0 : i32
    %26 = arith.cmpi ne, %25, %c0_i32_9 : i32
    scf.if %26 {
      %c4_i32_10 = arith.constant 4 : i32
      %27 = arith.muli %1, %c4_i32_10 : i32
      %28 = tpu.iota {dimensions = array<i32: 0>} : vector<4x256xi32>
      %29 = vector.broadcast %27 : i32 to vector<4x256xi32>
      %30 = arith.addi %29, %28 : vector<4x256xi32>
      %c4_i32_11 = arith.constant 4 : i32
      %31 = vector.broadcast %c4_i32_11 : i32 to vector<4x256xi32>
      %32 = arith.cmpi slt, %30, %31 : vector<4x256xi32>
      %cst = arith.constant 0.000000e+00 : f32
      %33 = vector.broadcast %cst : f32 to vector<4x256xf32>
      %34 = arith.select %32, %18, %33 : vector<4x256xi1>, vector<4x256xf32>
      %cst_12 = arith.constant dense<0.000000e+00> : vector<256xf32>
      %35 = vector.multi_reduction <add>, %34, %cst_12 [0] : vector<4x256xf32> to vector<256xf32>
      %36 = vector.shape_cast %35 : vector<256xf32> to vector<1x256xf32>
      %37 = tpu.iota {dimensions = array<i32: 0>} : vector<8x256xi32>
      %c0_i32_13 = arith.constant 0 : i32
      %38 = vector.broadcast %c0_i32_13 : i32 to vector<8x256xi32>
      %39 = arith.cmpi eq, %37, %38 : vector<8x256xi32>
      %c0_14 = arith.constant 0 : index
      %c0_15 = arith.constant 0 : index
      %40 = vector.load %arg5[%c0_14, %c0_15] : memref<8x256xf32, #tpu.memory_space<vmem>>, vector<8x256xf32>
      %cst_16 = arith.constant 0.000000e+00 : f32
      %41 = vector.shape_cast %36 : vector<1x256xf32> to vector<1x256xf32>
      %42 = vector.broadcast %41 : vector<1x256xf32> to vector<8x256xf32>
      %43 = vector.broadcast %cst_16 : f32 to vector<8x256xf32>
      %44 = arith.select %39, %42, %43 : vector<8x256xi1>, vector<8x256xf32>
      %45 = arith.addf %40, %44 : vector<8x256xf32>
      %c0_17 = arith.constant 0 : index
      %c0_18 = arith.constant 0 : index
      %46 = vector.load %arg5[%c0_17, %c0_18] : memref<8x256xf32, #tpu.memory_space<vmem>>, vector<8x256xf32>
      tpu.vector_store %arg5[%c0_17, %c0_18], %45 {strides = array<i32>} : memref<8x256xf32, #tpu.memory_space<vmem>>, vector<8x256xf32>,
    } else {
    }
    return
  }
  func.func @transform_0(%arg0: i32, %arg1: i32) -> (i32, i32) {
    %c1_i32 = arith.constant 1 : i32
    %0 = arith.muli %arg0, %c1_i32 : i32
    %1 = arith.addi %0, %arg1 : i32
    %c0_i32 = arith.constant 0 : i32
    %2 = arith.minsi %1, %c0_i32 : i32
    %c0_i32_0 = arith.constant 0 : i32
    %c0_i32_1 = arith.constant 0 : i32
    return %2, %c0_i32_0 : i32, i32
  }
  func.func @transform_1(%arg0: i32, %arg1: i32) -> (i32, i32) {
    %c0_i32 = arith.constant 0 : i32
    %c0_i32_0 = arith.constant 0 : i32
    %c0_i32_1 = arith.constant 0 : i32
    return %c0_i32, %c0_i32_0 : i32, i32
  }
  func.func @transform_2(%arg0: i32, %arg1: i32) -> (i32, i32) {
    %c0_i32 = arith.constant 0 : i32
    %c0_i32_0 = arith.constant 0 : i32
    %c0_i32_1 = arith.constant 0 : i32
    return %c0_i32, %c0_i32_0 : i32, i32
  }
  func.func @transform_3(%arg0: i32, %arg1: i32) -> (i32, i32) {
    %c0_i32 = arith.constant 0 : i32
    %c0_i32_0 = arith.constant 0 : i32
    return %arg0, %c0_i32 : i32, i32
  }
}

</mosaic_0001>

<llo_original>
// kernel: _loss_function_dense.2
$region0: #{_loss_function_dense.2}
  #allocation0 [shape = 'u32[]', space=smem, size = 0x4, offset = 0x4, fixed_abs, tag = 'smem constant byte address 0x4 - core index']
  #allocation1 [shape = 'u32[144,128]{1,0:T(1,128)}', space=vmem, size = 0x12000, scoped, tag = 'internal scratch']
  %s0 = inlined_call_operand.vmem [shape: f32[1,2048], index: 0, kind: input, shape index: {}]
  %s1 = inlined_call_operand.vmem [shape: f32[1,2048], index: 1, kind: input, shape index: {}]
  %s2 = inlined_call_operand.vmem [shape: f32[8,2048], index: 2, kind: output, shape index: {}]
  %s3 = sld [smem:[#allocation0]]
  $region30: #{_loss_function_dense.2} parent=0
    _
  %s5 = ssub.s32 1, %s3
  %s6 = scalar_select 0, %s5, %s3
  // Predicated region
  $region2: #{_loss_function_dense.2} parent=0 // pred_check
    _
  $region3: #{_loss_function_dense.2} parent=0 // pred_check_branch
    %8 = sbr.rel (0) target = $region5
  $region4: #{_loss_function_dense.2} parent=0 // pred_region
    %s9 = sadd.s32 0, 0
    %p10 = scmp.lt.s32.totalorder %s9, 0
    %s11 = scalar_select %p10, %s9, 0
    %p12 = scmp.lt.s32.totalorder %s11, 0
    %s13 = scalar_select %p12, %s11, 0
    %s14 = smul.addr %s13, 16
    %s15 = scalar_lea.vmem %s0, %s14
    %s16 = sadd.s32 0, 0
    %p17 = scmp.lt.s32.totalorder %s16, 0
    %s18 = scalar_select %p17, %s16, 0
  $region5: #{_loss_function_dense.2} parent=0 // pred_fallthru
    _
  // Predicated region
  $region6: #{_loss_function_dense.2} parent=0 // pred_check
    _
  $region7: #{_loss_function_dense.2} parent=0 // pred_check_branch
    %20 = sbr.rel (0) target = $region9
  $region8: #{_loss_function_dense.2} parent=0 // pred_region
    %s21 = sadd.s32 0, 0
    %p22 = scmp.lt.s32.totalorder %s21, 0
    %s23 = scalar_select %p22, %s21, 0
    %p24 = scmp.lt.s32.totalorder %s23, 0
    %s25 = scalar_select %p24, %s23, 0
    %s26 = smul.addr %s25, 16
    %s27 = scalar_lea.vmem %s1, %s26
    %s28 = sadd.s32 0, 0
    %p29 = scmp.lt.s32.totalorder %s28, 0
    %s30 = scalar_select %p29, %s28, 0
  $region9: #{_loss_function_dense.2} parent=0 // pred_fallthru
    _
  %s31 = sadd.s32 0, 0
  %p32 = scmp.lt.s32.totalorder %s31, 0
  %s33 = scalar_select %p32, %s31, 0
  %p34 = scmp.lt.s32.totalorder %s33, 0
  %s35 = scalar_select %p34, %s33, 0
  %s36 = smul.addr %s35, 16
  %s37 = scalar_lea.vmem %s0, %s36
  %s38 = sadd.s32 0, 0
  %p39 = scmp.lt.s32.totalorder %s38, 0
  %s40 = scalar_select %p39, %s38, 0
  %p41 = scmp.lt.s32.totalorder %s40, 0
  %s42 = scalar_select %p41, %s40, 0
  %s43 = smul.addr %s42, 16
  %s44 = scalar_lea.vmem %s1, %s43
  %s45 = sadd.s32 0, 0
  %p46 = scmp.lt.s32.totalorder %s45, 0
  %s47 = scalar_select %p46, %s45, 0
  %p48 = scmp.lt.s32.totalorder %s47, 0
  %s49 = scalar_select %p48, %s47, 0
  %s50 = smul.addr %s49, 16
  %s51 = scalar_lea.vmem %s0, %s50
  %s52 = sadd.s32 0, 0
  %p53 = scmp.lt.s32.totalorder %s52, 0
  %s54 = scalar_select %p53, %s52, 0
  %s55 = sadd.s32 0, 0
  %p56 = scmp.lt.s32.totalorder %s55, 0
  %s57 = scalar_select %p56, %s55, 0
  %p58 = scmp.lt.s32.totalorder %s57, 0
  %s59 = scalar_select %p58, %s57, 0
  %s60 = smul.addr %s59, 16
  %s61 = scalar_lea.vmem %s1, %s60
  %s62 = sadd.s32 0, 0
  %p63 = scmp.lt.s32.totalorder %s62, 0
  %s64 = scalar_select %p63, %s62, 0
  %s65 = sadd.s32 0, 0
  %p66 = scmp.eq.s32.totalorder 0, 0
  // Predicated region
  $region10: #{_loss_function_dense.2} parent=0 // pred_check
    %p67 = pneg %p66
  $region11: #{_loss_function_dense.2} parent=0 // pred_check_branch
    %69 = sbr.rel (%p67) target = $region13
  $region12: #{_loss_function_dense.2} parent=0 // pred_region
    %70 = vst [vmem:[%s2] sm:$0xff] 0.0
    %71 = vst [vmem:[%s2 + $0x8] sm:$0xff] 0.0
    %72 = vst [vmem:[%s2 + $0x10] sm:$0xff] 0.0
    %73 = vst [vmem:[%s2 + $0x18] sm:$0xff] 0.0
    %74 = vst [vmem:[%s2 + $0x20] sm:$0xff] 0.0
    %75 = vst [vmem:[%s2 + $0x28] sm:$0xff] 0.0
    %76 = vst [vmem:[%s2 + $0x30] sm:$0xff] 0.0
    %77 = vst [vmem:[%s2 + $0x38] sm:$0xff] 0.0
    %78 = vst [vmem:[%s2 + $0x40] sm:$0xff] 0.0
    %79 = vst [vmem:[%s2 + $0x48] sm:$0xff] 0.0
    %80 = vst [vmem:[%s2 + $0x50] sm:$0xff] 0.0
    %81 = vst [vmem:[%s2 + $0x58] sm:$0xff] 0.0
    %82 = vst [vmem:[%s2 + $0x60] sm:$0xff] 0.0
    %83 = vst [vmem:[%s2 + $0x68] sm:$0xff] 0.0
    %84 = vst [vmem:[%s2 + $0x70] sm:$0xff] 0.0
    %85 = vst [vmem:[%s2 + $0x78] sm:$0xff] 0.0
  $region13: #{_loss_function_dense.2} parent=0 // pred_fallthru
    _
  %v86 = vld [vmem:[%s51] sm:$0xff]
  %v87 = vld [vmem:[%s51 + $0x8] sm:$0xff]
  %v88 = vld [vmem:[%s61] sm:$0xff]
  %v89 = vld [vmem:[%s61 + $0x8] sm:$0xff]
  %v90 = vsub.f32 %v86, %v88
  %v91 = vsub.f32 %v87, %v89
  %v92 = vmul.f32 %v90, %v90
  %v93 = vmul.f32 %v91, %v91
  %s94 = sadd.s32 %s65, 1
  %p95 = scmp.le.s32.totalorder %s94, 1
  // Predicated region
  $region14: #{_loss_function_dense.2} parent=0 // pred_check
    %p96 = pneg %p95
  $region15: #{_loss_function_dense.2} parent=0 // pred_check_branch
    %98 = sbr.rel (%p96) target = $region17
  $region16: #{_loss_function_dense.2} parent=0 // pred_region
    %v99 = vadd.f32 %v92, 0.0
    %v100 = vadd.f32 %v93, 0.0
    %v101 = vlaneseq
    %v102 = vshrl.u32 %v101, 7
    %vm103 = vcmp.eq.s32.totalorder %v102, 0
    %v104 = vld [vmem:[%s2] sm:$0xff]
    %v105 = vld [vmem:[%s2 + $0x8] sm:$0xff]
    %v106 = vld [vmem:[%s2 + $0x10] sm:$0xff]
    %v107 = vld [vmem:[%s2 + $0x18] sm:$0xff]
    %v108 = vld [vmem:[%s2 + $0x20] sm:$0xff]
    %v109 = vld [vmem:[%s2 + $0x28] sm:$0xff]
    %v110 = vld [vmem:[%s2 + $0x30] sm:$0xff]
    %v111 = vld [vmem:[%s2 + $0x38] sm:$0xff]
    %v112 = vld [vmem:[%s2 + $0x40] sm:$0xff]
    %v113 = vld [vmem:[%s2 + $0x48] sm:$0xff]
    %v114 = vld [vmem:[%s2 + $0x50] sm:$0xff]
    %v115 = vld [vmem:[%s2 + $0x58] sm:$0xff]
    %v116 = vld [vmem:[%s2 + $0x60] sm:$0xff]
    %v117 = vld [vmem:[%s2 + $0x68] sm:$0xff]
    %v118 = vld [vmem:[%s2 + $0x70] sm:$0xff]
    %v119 = vld [vmem:[%s2 + $0x78] sm:$0xff]
    %v122 = vlaneseq
    %v123 = vshrl.u32 %v122, 7
    %v124 = vsub.s32 0, %v123
    %v125 = vrot.slane %v99, %v124
    %v126 = vlaneseq
    %v127 = vshrl.u32 %v126, 7
    %v128 = vsub.s32 1, %v127
    %v129 = vrot.slane %v99, %v128
    %v130 = vlaneseq
    %v131 = vshrl.u32 %v130, 7
    %v132 = vsub.s32 2, %v131
    %v133 = vrot.slane %v99, %v132
    %v134 = vlaneseq
    %v135 = vshrl.u32 %v134, 7
    %v136 = vsub.s32 3, %v135
    %v137 = vrot.slane %v99, %v136
    %v138 = vlaneseq
    %v139 = vshrl.u32 %v138, 7
    %v140 = vsub.s32 4, %v139
    %v141 = vrot.slane %v99, %v140
    %v142 = vlaneseq
    %v143 = vshrl.u32 %v142, 7
    %v144 = vsub.s32 5, %v143
    %v145 = vrot.slane %v99, %v144
    %v146 = vlaneseq
    %v147 = vshrl.u32 %v146, 7
    %v148 = vsub.s32 6, %v147
    %v149 = vrot.slane %v99, %v148
    %v150 = vlaneseq
    %v151 = vshrl.u32 %v150, 7
    %v152 = vsub.s32 7, %v151
    %v153 = vrot.slane %v99, %v152
    %v154 = vlaneseq
    %v155 = vshrl.u32 %v154, 7
    %v156 = vsub.s32 0, %v155
    %v157 = vrot.slane %v100, %v156
    %v158 = vlaneseq
    %v159 = vshrl.u32 %v158, 7
    %v160 = vsub.s32 1, %v159
    %v161 = vrot.slane %v100, %v160
    %v162 = vlaneseq
    %v163 = vshrl.u32 %v162, 7
    %v164 = vsub.s32 2, %v163
    %v165 = vrot.slane %v100, %v164
    %v166 = vlaneseq
    %v167 = vshrl.u32 %v166, 7
    %v168 = vsub.s32 3, %v167
    %v169 = vrot.slane %v100, %v168
    %v170 = vlaneseq
    %v171 = vshrl.u32 %v170, 7
    %v172 = vsub.s32 4, %v171
    %v173 = vrot.slane %v100, %v172
    %v174 = vlaneseq
    %v175 = vshrl.u32 %v174, 7
    %v176 = vsub.s32 5, %v175
    %v177 = vrot.slane %v100, %v176
    %v178 = vlaneseq
    %v179 = vshrl.u32 %v178, 7
    %v180 = vsub.s32 6, %v179
    %v181 = vrot.slane %v100, %v180
    %v182 = vlaneseq
    %v183 = vshrl.u32 %v182, 7
    %v184 = vsub.s32 7, %v183
    %v185 = vrot.slane %v100, %v184
    %v202 = vsel %vm103, %v125, 0.0
    %v203 = vsel %vm103, %v129, 0.0
    %v204 = vsel %vm103, %v133, 0.0
    %v205 = vsel %vm103, %v137, 0.0
    %v206 = vsel %vm103, %v141, 0.0
    %v207 = vsel %vm103, %v145, 0.0
    %v208 = vsel %vm103, %v149, 0.0
    %v209 = vsel %vm103, %v153, 0.0
    %v210 = vsel %vm103, %v157, 0.0
    %v211 = vsel %vm103, %v161, 0.0
    %v212 = vsel %vm103, %v165, 0.0
    %v213 = vsel %vm103, %v169, 0.0
    %v214 = vsel %vm103, %v173, 0.0
    %v215 = vsel %vm103, %v177, 0.0
    %v216 = vsel %vm103, %v181, 0.0
    %v217 = vsel %vm103, %v185, 0.0
    %v218 = vadd.f32 %v104, %v202
    %v219 = vadd.f32 %v105, %v203
    %v220 = vadd.f32 %v106, %v204
    %v221 = vadd.f32 %v107, %v205
    %v222 = vadd.f32 %v108, %v206
    %v223 = vadd.f32 %v109, %v207
    %v224 = vadd.f32 %v110, %v208
    %v225 = vadd.f32 %v111, %v209
    %v226 = vadd.f32 %v112, %v210
    %v227 = vadd.f32 %v113, %v211
    %v228 = vadd.f32 %v114, %v212
    %v229 = vadd.f32 %v115, %v213
    %v230 = vadd.f32 %v116, %v214
    %v231 = vadd.f32 %v117, %v215
    %v232 = vadd.f32 %v118, %v216
    %v233 = vadd.f32 %v119, %v217
    %234 = vst [vmem:[%s2] sm:$0xff] %v218
    %235 = vst [vmem:[%s2 + $0x8] sm:$0xff] %v219
    %236 = vst [vmem:[%s2 + $0x10] sm:$0xff] %v220
    %237 = vst [vmem:[%s2 + $0x18] sm:$0xff] %v221
    %238 = vst [vmem:[%s2 + $0x20] sm:$0xff] %v222
    %239 = vst [vmem:[%s2 + $0x28] sm:$0xff] %v223
    %240 = vst [vmem:[%s2 + $0x30] sm:$0xff] %v224
    %241 = vst [vmem:[%s2 + $0x38] sm:$0xff] %v225
    %242 = vst [vmem:[%s2 + $0x40] sm:$0xff] %v226
    %243 = vst [vmem:[%s2 + $0x48] sm:$0xff] %v227
    %244 = vst [vmem:[%s2 + $0x50] sm:$0xff] %v228
    %245 = vst [vmem:[%s2 + $0x58] sm:$0xff] %v229
    %246 = vst [vmem:[%s2 + $0x60] sm:$0xff] %v230
    %247 = vst [vmem:[%s2 + $0x68] sm:$0xff] %v231
    %248 = vst [vmem:[%s2 + $0x70] sm:$0xff] %v232
    %249 = vst [vmem:[%s2 + $0x78] sm:$0xff] %v233
  $region17: #{_loss_function_dense.2} parent=0 // pred_fallthru
    _
  %p250 = scmp.gt.s32.totalorder %s94, 1
  // Predicated region
  $region18: #{_loss_function_dense.2} parent=0 // pred_check
    %p251 = pneg %p250
  $region19: #{_loss_function_dense.2} parent=0 // pred_check_branch
    %253 = sbr.rel (%p251) target = $region21
  $region20: #{_loss_function_dense.2} parent=0 // pred_region
    %v254 = vlaneseq
    %v255 = vshrl.u32 %v254, 7
    %v256 = vstv %s65
    %v257 = vadd.s32 %v256, %v255
    %vm258 = vcmp.lt.s32.totalorder %v257, 1
    %v261 = vlaneseq
    %v262 = vshrl.u32 %v261, 7
    %v263 = vsub.s32 0, %v262
    %v264 = vrot.slane %v92, %v263
    %v265 = vlaneseq
    %v266 = vshrl.u32 %v265, 7
    %v267 = vsub.s32 1, %v266
    %v268 = vrot.slane %v92, %v267
    %v269 = vlaneseq
    %v270 = vshrl.u32 %v269, 7
    %v271 = vsub.s32 2, %v270
    %v272 = vrot.slane %v92, %v271
    %v273 = vlaneseq
    %v274 = vshrl.u32 %v273, 7
    %v275 = vsub.s32 3, %v274
    %v276 = vrot.slane %v92, %v275
    %v277 = vlaneseq
    %v278 = vshrl.u32 %v277, 7
    %v279 = vsub.s32 4, %v278
    %v280 = vrot.slane %v92, %v279
    %v281 = vlaneseq
    %v282 = vshrl.u32 %v281, 7
    %v283 = vsub.s32 5, %v282
    %v284 = vrot.slane %v92, %v283
    %v285 = vlaneseq
    %v286 = vshrl.u32 %v285, 7
    %v287 = vsub.s32 6, %v286
    %v288 = vrot.slane %v92, %v287
    %v289 = vlaneseq
    %v290 = vshrl.u32 %v289, 7
    %v291 = vsub.s32 7, %v290
    %v292 = vrot.slane %v92, %v291
    %v293 = vlaneseq
    %v294 = vshrl.u32 %v293, 7
    %v295 = vsub.s32 0, %v294
    %v296 = vrot.slane %v93, %v295
    %v297 = vlaneseq
    %v298 = vshrl.u32 %v297, 7
    %v299 = vsub.s32 1, %v298
    %v300 = vrot.slane %v93, %v299
    %v301 = vlaneseq
    %v302 = vshrl.u32 %v301, 7
    %v303 = vsub.s32 2, %v302
    %v304 = vrot.slane %v93, %v303
    %v305 = vlaneseq
    %v306 = vshrl.u32 %v305, 7
    %v307 = vsub.s32 3, %v306
    %v308 = vrot.slane %v93, %v307
    %v309 = vlaneseq
    %v310 = vshrl.u32 %v309, 7
    %v311 = vsub.s32 4, %v310
    %v312 = vrot.slane %v93, %v311
    %v313 = vlaneseq
    %v314 = vshrl.u32 %v313, 7
    %v315 = vsub.s32 5, %v314
    %v316 = vrot.slane %v93, %v315
    %v317 = vlaneseq
    %v318 = vshrl.u32 %v317, 7
    %v319 = vsub.s32 6, %v318
    %v320 = vrot.slane %v93, %v319
    %v321 = vlaneseq
    %v322 = vshrl.u32 %v321, 7
    %v323 = vsub.s32 7, %v322
    %v324 = vrot.slane %v93, %v323
    %v341 = vsel %vm258, %v264, 0.0
    %v342 = vsel %vm258, %v268, 0.0
    %v343 = vsel %vm258, %v272, 0.0
    %v344 = vsel %vm258, %v276, 0.0
    %v345 = vsel %vm258, %v280, 0.0
    %v346 = vsel %vm258, %v284, 0.0
    %v347 = vsel %vm258, %v288, 0.0
    %v348 = vsel %vm258, %v292, 0.0
    %v349 = vsel %vm258, %v296, 0.0
    %v350 = vsel %vm258, %v300, 0.0
    %v351 = vsel %vm258, %v304, 0.0
    %v352 = vsel %vm258, %v308, 0.0
    %v353 = vsel %vm258, %v312, 0.0
    %v354 = vsel %vm258, %v316, 0.0
    %v355 = vsel %vm258, %v320, 0.0
    %v356 = vsel %vm258, %v324, 0.0
    %v357 = vadd.f32 %v341, 0.0
    %v358 = vadd.f32 %v342, 0.0
    %v359 = vadd.f32 %v343, 0.0
    %v360 = vadd.f32 %v344, 0.0
    %v361 = vadd.f32 %v345, 0.0
    %v362 = vadd.f32 %v346, 0.0
    %v363 = vadd.f32 %v347, 0.0
    %v364 = vadd.f32 %v348, 0.0
    %v365 = vadd.f32 %v349, 0.0
    %v366 = vadd.f32 %v350, 0.0
    %v367 = vadd.f32 %v351, 0.0
    %v368 = vadd.f32 %v352, 0.0
    %v369 = vadd.f32 %v353, 0.0
    %v370 = vadd.f32 %v354, 0.0
    %v371 = vadd.f32 %v355, 0.0
    %v372 = vadd.f32 %v356, 0.0
    %vm373 = vcmp.eq.s32.totalorder %v255, 0
    %v374 = vld [vmem:[%s2] sm:$0xff]
    %v375 = vld [vmem:[%s2 + $0x8] sm:$0xff]
    %v376 = vld [vmem:[%s2 + $0x10] sm:$0xff]
    %v377 = vld [vmem:[%s2 + $0x18] sm:$0xff]
    %v378 = vld [vmem:[%s2 + $0x20] sm:$0xff]
    %v379 = vld [vmem:[%s2 + $0x28] sm:$0xff]
    %v380 = vld [vmem:[%s2 + $0x30] sm:$0xff]
    %v381 = vld [vmem:[%s2 + $0x38] sm:$0xff]
    %v382 = vld [vmem:[%s2 + $0x40] sm:$0xff]
    %v383 = vld [vmem:[%s2 + $0x48] sm:$0xff]
    %v384 = vld [vmem:[%s2 + $0x50] sm:$0xff]
    %v385 = vld [vmem:[%s2 + $0x58] sm:$0xff]
    %v386 = vld [vmem:[%s2 + $0x60] sm:$0xff]
    %v387 = vld [vmem:[%s2 + $0x68] sm:$0xff]
    %v388 = vld [vmem:[%s2 + $0x70] sm:$0xff]
    %v389 = vld [vmem:[%s2 + $0x78] sm:$0xff]
    %v390 = vlaneseq
    %v391 = vshrl.u32 %v390, 7
    %v392 = vsub.s32 0, %v391
    %v393 = vrot.slane %v357, %v392
    %v394 = vlaneseq
    %v395 = vshrl.u32 %v394, 7
    %v396 = vsub.s32 0, %v395
    %v397 = vrot.slane %v358, %v396
    %v398 = vlaneseq
    %v399 = vshrl.u32 %v398, 7
    %v400 = vsub.s32 0, %v399
    %v401 = vrot.slane %v359, %v400
    %v402 = vlaneseq
    %v403 = vshrl.u32 %v402, 7
    %v404 = vsub.s32 0, %v403
    %v405 = vrot.slane %v360, %v404
    %v406 = vlaneseq
    %v407 = vshrl.u32 %v406, 7
    %v408 = vsub.s32 0, %v407
    %v409 = vrot.slane %v361, %v408
    %v410 = vlaneseq
    %v411 = vshrl.u32 %v410, 7
    %v412 = vsub.s32 0, %v411
    %v413 = vrot.slane %v362, %v412
    %v414 = vlaneseq
    %v415 = vshrl.u32 %v414, 7
    %v416 = vsub.s32 0, %v415
    %v417 = vrot.slane %v363, %v416
    %v418 = vlaneseq
    %v419 = vshrl.u32 %v418, 7
    %v420 = vsub.s32 0, %v419
    %v421 = vrot.slane %v364, %v420
    %v422 = vlaneseq
    %v423 = vshrl.u32 %v422, 7
    %v424 = vsub.s32 0, %v423
    %v425 = vrot.slane %v365, %v424
    %v426 = vlaneseq
    %v427 = vshrl.u32 %v426, 7
    %v428 = vsub.s32 0, %v427
    %v429 = vrot.slane %v366, %v428
    %v430 = vlaneseq
    %v431 = vshrl.u32 %v430, 7
    %v432 = vsub.s32 0, %v431
    %v433 = vrot.slane %v367, %v432
    %v434 = vlaneseq
    %v435 = vshrl.u32 %v434, 7
    %v436 = vsub.s32 0, %v435
    %v437 = vrot.slane %v368, %v436
    %v438 = vlaneseq
    %v439 = vshrl.u32 %v438, 7
    %v440 = vsub.s32 0, %v439
    %v441 = vrot.slane %v369, %v440
    %v442 = vlaneseq
    %v443 = vshrl.u32 %v442, 7
    %v444 = vsub.s32 0, %v443
    %v445 = vrot.slane %v370, %v444
    %v446 = vlaneseq
    %v447 = vshrl.u32 %v446, 7
    %v448 = vsub.s32 0, %v447
    %v449 = vrot.slane %v371, %v448
    %v450 = vlaneseq
    %v451 = vshrl.u32 %v450, 7
    %v452 = vsub.s32 0, %v451
    %v453 = vrot.slane %v372, %v452
    %v454 = vsel %vm373, %v393, 0.0
    %v455 = vsel %vm373, %v397, 0.0
    %v456 = vsel %vm373, %v401, 0.0
    %v457 = vsel %vm373, %v405, 0.0
    %v458 = vsel %vm373, %v409, 0.0
    %v459 = vsel %vm373, %v413, 0.0
    %v460 = vsel %vm373, %v417, 0.0
    %v461 = vsel %vm373, %v421, 0.0
    %v462 = vsel %vm373, %v425, 0.0
    %v463 = vsel %vm373, %v429, 0.0
    %v464 = vsel %vm373, %v433, 0.0
    %v465 = vsel %vm373, %v437, 0.0
    %v466 = vsel %vm373, %v441, 0.0
    %v467 = vsel %vm373, %v445, 0.0
    %v468 = vsel %vm373, %v449, 0.0
    %v469 = vsel %vm373, %v453, 0.0
    %v470 = vadd.f32 %v374, %v454
    %v471 = vadd.f32 %v375, %v455
    %v472 = vadd.f32 %v376, %v456
    %v473 = vadd.f32 %v377, %v457
    %v474 = vadd.f32 %v378, %v458
    %v475 = vadd.f32 %v379, %v459
    %v476 = vadd.f32 %v380, %v460
    %v477 = vadd.f32 %v381, %v461
    %v478 = vadd.f32 %v382, %v462
    %v479 = vadd.f32 %v383, %v463
    %v480 = vadd.f32 %v384, %v464
    %v481 = vadd.f32 %v385, %v465
    %v482 = vadd.f32 %v386, %v466
    %v483 = vadd.f32 %v387, %v467
    %v484 = vadd.f32 %v388, %v468
    %v485 = vadd.f32 %v389, %v469
    %486 = vst [vmem:[%s2] sm:$0xff] %v470
    %487 = vst [vmem:[%s2 + $0x8] sm:$0xff] %v471
    %488 = vst [vmem:[%s2 + $0x10] sm:$0xff] %v472
    %489 = vst [vmem:[%s2 + $0x18] sm:$0xff] %v473
    %490 = vst [vmem:[%s2 + $0x20] sm:$0xff] %v474
    %491 = vst [vmem:[%s2 + $0x28] sm:$0xff] %v475
    %492 = vst [vmem:[%s2 + $0x30] sm:$0xff] %v476
    %493 = vst [vmem:[%s2 + $0x38] sm:$0xff] %v477
    %494 = vst [vmem:[%s2 + $0x40] sm:$0xff] %v478
    %495 = vst [vmem:[%s2 + $0x48] sm:$0xff] %v479
    %496 = vst [vmem:[%s2 + $0x50] sm:$0xff] %v480
    %497 = vst [vmem:[%s2 + $0x58] sm:$0xff] %v481
    %498 = vst [vmem:[%s2 + $0x60] sm:$0xff] %v482
    %499 = vst [vmem:[%s2 + $0x68] sm:$0xff] %v483
    %500 = vst [vmem:[%s2 + $0x70] sm:$0xff] %v484
    %501 = vst [vmem:[%s2 + $0x78] sm:$0xff] %v485
  $region21: #{_loss_function_dense.2} parent=0 // pred_fallthru
    _
  // Predicated region
  $region22: #{_loss_function_dense.2} parent=0 // pred_check
    _
  $region23: #{_loss_function_dense.2} parent=0 // pred_check_branch
    %503 = sbr.rel (0) target = $region25
  $region24: #{_loss_function_dense.2} parent=0 // pred_region
    _
  $region25: #{_loss_function_dense.2} parent=0 // pred_fallthru
    _
  // Predicated region
  $region26: #{_loss_function_dense.2} parent=0 // pred_check
    _
  $region27: #{_loss_function_dense.2} parent=0 // pred_check_branch
    %505 = sbr.rel (0) target = $region29
  $region28: #{_loss_function_dense.2} parent=0 // pred_region
    _
  $region29: #{_loss_function_dense.2} parent=0 // pred_fallthru
    _

// kernel: _loss_function_dense.3
$region0: #{_loss_function_dense.3}
  #allocation0 [shape = 'u32[]', space=smem, size = 0x4, offset = 0x4, fixed_abs, tag = 'smem constant byte address 0x4 - core index']
  #allocation1 [shape = 'u32[144,128]{1,0:T(1,128)}', space=vmem, size = 0x12000, scoped, tag = 'internal scratch']
  %s0 = inlined_call_operand.vmem [shape: f32[4,256], index: 0, kind: input, shape index: {}]
  %s1 = inlined_call_operand.vmem [shape: f32[1,256], index: 1, kind: input, shape index: {}]
  %s2 = inlined_call_operand.vmem [shape: f32[1,256], index: 2, kind: input, shape index: {}]
  %s3 = inlined_call_operand.vmem [shape: f32[8,256], index: 3, kind: output, shape index: {}]
  %s4 = sld [smem:[#allocation0]]
  $region34: #{_loss_function_dense.3} parent=0
    _
  %s6 = ssub.s32 1, %s4
  %s7 = scalar_select 0, %s6, %s4
  // Predicated region
  $region2: #{_loss_function_dense.3} parent=0 // pred_check
    _
  $region3: #{_loss_function_dense.3} parent=0 // pred_check_branch
    %9 = sbr.rel (0) target = $region5
  $region4: #{_loss_function_dense.3} parent=0 // pred_region
    %s10 = sadd.s32 0, 0
    %p11 = scmp.lt.s32.totalorder %s10, 0
    %s12 = scalar_select %p11, %s10, 0
    %p13 = scmp.lt.s32.totalorder %s12, 0
    %s14 = scalar_select %p13, %s12, 0
    %s15 = smul.addr %s14, 2
    %s16 = smul.addr %s15, 4
    %s17 = scalar_lea.vmem %s0, %s16
    %s18 = sadd.s32 0, 0
    %p19 = scmp.lt.s32.totalorder %s18, 0
    %s20 = scalar_select %p19, %s18, 0
  $region5: #{_loss_function_dense.3} parent=0 // pred_fallthru
    _
  // Predicated region
  $region6: #{_loss_function_dense.3} parent=0 // pred_check
    _
  $region7: #{_loss_function_dense.3} parent=0 // pred_check_branch
    %22 = sbr.rel (0) target = $region9
  $region8: #{_loss_function_dense.3} parent=0 // pred_region
    _
  $region9: #{_loss_function_dense.3} parent=0 // pred_fallthru
    _
  // Predicated region
  $region10: #{_loss_function_dense.3} parent=0 // pred_check
    _
  $region11: #{_loss_function_dense.3} parent=0 // pred_check_branch
    %24 = sbr.rel (0) target = $region13
  $region12: #{_loss_function_dense.3} parent=0 // pred_region
    _
  $region13: #{_loss_function_dense.3} parent=0 // pred_fallthru
    _
  %s25 = sadd.s32 0, 0
  %p26 = scmp.lt.s32.totalorder %s25, 0
  %s27 = scalar_select %p26, %s25, 0
  %p28 = scmp.lt.s32.totalorder %s27, 0
  %s29 = scalar_select %p28, %s27, 0
  %s30 = smul.addr %s29, 2
  %s31 = smul.addr %s30, 4
  %s32 = scalar_lea.vmem %s0, %s31
  %s33 = sadd.s32 0, 0
  %p34 = scmp.lt.s32.totalorder %s33, 0
  %s35 = scalar_select %p34, %s33, 0
  %p36 = scmp.lt.s32.totalorder %s35, 0
  %s37 = scalar_select %p36, %s35, 0
  %s38 = smul.addr %s37, 2
  %s39 = smul.addr %s38, 4
  %s40 = scalar_lea.vmem %s0, %s39
  %s41 = sadd.s32 0, 0
  %p42 = scmp.lt.s32.totalorder %s41, 0
  %s43 = scalar_select %p42, %s41, 0
  %s44 = sadd.s32 0, 0
  %p45 = scmp.eq.s32.totalorder 0, 0
  // Predicated region
  $region14: #{_loss_function_dense.3} parent=0 // pred_check
    %p46 = pneg %p45
  $region15: #{_loss_function_dense.3} parent=0 // pred_check_branch
    %48 = sbr.rel (%p46) target = $region17
  $region16: #{_loss_function_dense.3} parent=0 // pred_region
    %49 = vst [vmem:[%s3] sm:$0xff] 0.0
    %50 = vst [vmem:[%s3 + $0x8] sm:$0xff] 0.0
  $region17: #{_loss_function_dense.3} parent=0 // pred_fallthru
    _
  %v51 = vld [vmem:[%s40] sm:$0xff]
  %v53 = vcombine.high %v51, %v51
  %55 = vrot.lane.b32.xlu0 %v51, 127
  %v56 = vpop.permute.xlu0 %55
  %57 = vrot.lane.b32.xlu0 %v53, 127
  %v58 = vpop.permute.xlu0 %57
  %v59 = vlaneseq
  %v60 = vand.u32 %v59, 127
  %vm61 = vcmp.lt.s32.totalorder %v60, 127
  %v62 = vsel %vm61, %v56, %v58
  %v63 = vsel %vm61, %v58, %v56
  %v64 = vsub.f32 %v62, %v51
  %v65 = vsub.f32 %v63, %v53
  %66 = vrot.lane.b32.xlu0 %v51, 112
  %v67 = vpop.permute.xlu0 %66
  %68 = vrot.lane.b32.xlu0 %v53, 112
  %v69 = vpop.permute.xlu0 %68
  %vm70 = vcmp.lt.s32.totalorder %v60, 112
  %v71 = vsel %vm70, %v67, %v69
  %v72 = vsel %vm70, %v69, %v67
  %v73 = vsub.f32 %v71, %v51
  %v74 = vsub.f32 %v72, %v53
  %v75 = vmul.f32 %v64, %v64
  %v76 = vmul.f32 %v65, %v65
  %v77 = vld [vmem:[%s1] sm:$0x3]
  %v79 = vlaneseq
  %v80 = vshrl.u32 %v79, 7
  %v81 = vsub.s32 0, %v80
  %v82 = vrot.slane %v77, %v81
  %v83 = vlaneseq
  %v84 = vshrl.u32 %v83, 7
  %v85 = vsub.s32 1, %v84
  %v86 = vrot.slane %v77, %v85
  %v89 = vmul.f32 %v75, %v82
  %v90 = vmul.f32 %v76, %v86
  %v91 = vmul.f32 %v73, %v73
  %v92 = vmul.f32 %v74, %v74
  %v93 = vld [vmem:[%s2] sm:$0x3]
  %v95 = vlaneseq
  %v96 = vshrl.u32 %v95, 7
  %v97 = vsub.s32 0, %v96
  %v98 = vrot.slane %v93, %v97
  %v99 = vlaneseq
  %v100 = vshrl.u32 %v99, 7
  %v101 = vsub.s32 1, %v100
  %v102 = vrot.slane %v93, %v101
  %v105 = vmul.f32 %v91, %v98
  %v106 = vmul.f32 %v92, %v102
  %v107 = vadd.f32 %v89, %v105
  %v108 = vadd.f32 %v90, %v106
  %s109 = sadd.s32 %s44, 1
  %s110 = smul.u32 %s109, 4
  %p111 = scmp.le.s32.totalorder %s110, 4
  // Predicated region
  $region18: #{_loss_function_dense.3} parent=0 // pred_check
    %p112 = pneg %p111
  $region19: #{_loss_function_dense.3} parent=0 // pred_check_branch
    %114 = sbr.rel (%p112) target = $region21
  $region20: #{_loss_function_dense.3} parent=0 // pred_region
    %vm115 = vcmask 1043456
    %v116 = vsel %vm115, %v107, 0.0
    %v117 = vrot.slane %v116, 4
    %v118 = vadd.f32 %v116, %v117
    %v119 = vrot.slane %v118, 2
    %v120 = vadd.f32 %v118, %v119
    %v121 = vrot.slane %v120, 1
    %v122 = vadd.f32 %v120, %v121
    %v123 = vsel %vm115, %v108, 0.0
    %v124 = vrot.slane %v123, 4
    %v125 = vadd.f32 %v123, %v124
    %v126 = vrot.slane %v125, 2
    %v127 = vadd.f32 %v125, %v126
    %v128 = vrot.slane %v127, 1
    %v129 = vadd.f32 %v127, %v128
    %v130 = vlaneseq
    %v131 = vshrl.u32 %v130, 7
    %vm132 = vcmp.eq.s32.totalorder %v131, 0
    %v133 = vld [vmem:[%s3] sm:$0xff]
    %v134 = vld [vmem:[%s3 + $0x8] sm:$0xff]
    %v135 = vsel %vm132, %v122, 0.0
    %v136 = vsel %vm132, %v129, 0.0
    %v137 = vadd.f32 %v133, %v135
    %v138 = vadd.f32 %v134, %v136
    %139 = vst [vmem:[%s3] sm:$0xff] %v137
    %140 = vst [vmem:[%s3 + $0x8] sm:$0xff] %v138
  $region21: #{_loss_function_dense.3} parent=0 // pred_fallthru
    _
  %p141 = scmp.gt.s32.totalorder %s110, 4
  // Predicated region
  $region22: #{_loss_function_dense.3} parent=0 // pred_check
    %p142 = pneg %p141
  $region23: #{_loss_function_dense.3} parent=0 // pred_check_branch
    %144 = sbr.rel (%p142) target = $region25
  $region24: #{_loss_function_dense.3} parent=0 // pred_region
    %s145 = smul.u32 %s44, 4
    %v146 = vlaneseq
    %v147 = vshrl.u32 %v146, 7
    %v148 = vstv %s145
    %v149 = vadd.s32 %v148, %v147
    %vm150 = vcmp.lt.s32.totalorder %v149, 4
    %v151 = vsel %vm150, %v107, 0.0
    %v152 = vsel %vm150, %v108, 0.0
    %vm153 = vcmask 1043456
    %v154 = vsel %vm153, %v151, 0.0
    %v155 = vrot.slane %v154, 4
    %v156 = vadd.f32 %v154, %v155
    %v157 = vrot.slane %v156, 2
    %v158 = vadd.f32 %v156, %v157
    %v159 = vrot.slane %v158, 1
    %v160 = vadd.f32 %v158, %v159
    %v161 = vsel %vm153, %v152, 0.0
    %v162 = vrot.slane %v161, 4
    %v163 = vadd.f32 %v161, %v162
    %v164 = vrot.slane %v163, 2
    %v165 = vadd.f32 %v163, %v164
    %v166 = vrot.slane %v165, 1
    %v167 = vadd.f32 %v165, %v166
    %vm168 = vcmp.eq.s32.totalorder %v147, 0
    %v169 = vld [vmem:[%s3] sm:$0xff]
    %v170 = vld [vmem:[%s3 + $0x8] sm:$0xff]
    %v171 = vsel %vm168, %v160, 0.0
    %v172 = vsel %vm168, %v167, 0.0
    %v173 = vadd.f32 %v169, %v171
    %v174 = vadd.f32 %v170, %v172
    %175 = vst [vmem:[%s3] sm:$0xff] %v173
    %176 = vst [vmem:[%s3 + $0x8] sm:$0xff] %v174
  $region25: #{_loss_function_dense.3} parent=0 // pred_fallthru
    _
  // Predicated region
  $region26: #{_loss_function_dense.3} parent=0 // pred_check
    _
  $region27: #{_loss_function_dense.3} parent=0 // pred_check_branch
    %178 = sbr.rel (0) target = $region29
  $region28: #{_loss_function_dense.3} parent=0 // pred_region
    _
  $region29: #{_loss_function_dense.3} parent=0 // pred_fallthru
    _
  // Predicated region
  $region30: #{_loss_function_dense.3} parent=0 // pred_check
    _
  $region31: #{_loss_function_dense.3} parent=0 // pred_check_branch
    %180 = sbr.rel (0) target = $region33
  $region32: #{_loss_function_dense.3} parent=0 // pred_region
    _
  $region33: #{_loss_function_dense.3} parent=0 // pred_fallthru
    _

</llo_original>
